<compile_context>
chip_gen: v7x
topology: tpu7x:2x2x1
jax: 0.10.0
libtpu: 0.0.40
codegen_flags: <defaults>
</compile_context>

<pallas_src>
import jax
import jax.numpy as jnp
from jax import lax
from jax.experimental import pallas as pl
from jax.experimental.pallas import tpu as pltpu

LATENT = 32
EPS = 1e-5  # torch.nn.LayerNorm default

_COMPILER_PARAMS = pltpu.CompilerParams(
    dimension_semantics=("parallel",),
)


def _round_up(a, b):
    return ((a + b - 1) // b) * b


def _choose_tile(n, requested):
    t = min(requested, _round_up(n, 8))
    return _round_up(t, 8)


# ---------------------------------------------------------------------------
# Fused 4-layer MLP + LayerNorm on a [T, K_in] feature tile.
#   w_ref : [K_in + 3*32, 32] packed weight stack (compute dtype, bf16 in the
#           perf mode), rows [0:K_in]=W1, then W2, W3, W4.
#   v_ref : [8, 32] f32 stack, rows = b1, b2, b3, b4, gamma, beta, pad, pad.
# Matmuls accumulate in f32 (preferred_element_type); LayerNorm stats in f32.
# ---------------------------------------------------------------------------
def _mlp_ln(feat, w_ref, v_ref, k_in):
    cdt = w_ref.dtype
    f32 = jnp.float32
    w1 = w_ref[0:k_in, :]
    w2 = w_ref[k_in:k_in + LATENT, :]
    w3 = w_ref[k_in + LATENT:k_in + 2 * LATENT, :]
    w4 = w_ref[k_in + 2 * LATENT:k_in + 3 * LATENT, :]
    b1 = v_ref[0:1, :]
    b2 = v_ref[1:2, :]
    b3 = v_ref[2:3, :]
    b4 = v_ref[3:4, :]
    gamma = v_ref[4:5, :]
    beta = v_ref[5:6, :]

    h = jnp.dot(feat, w1, preferred_element_type=f32) + b1
    h = jnp.maximum(h, 0.0)
    h = jnp.dot(h.astype(cdt), w2, preferred_element_type=f32) + b2
    h = jnp.maximum(h, 0.0)
    h = jnp.dot(h.astype(cdt), w3, preferred_element_type=f32) + b3
    h = jnp.maximum(h, 0.0)
    h = jnp.dot(h.astype(cdt), w4, preferred_element_type=f32) + b4

    mean = jnp.mean(h, axis=-1, keepdims=True)
    var = jnp.mean(jnp.square(h - mean), axis=-1, keepdims=True)
    y = (h - mean) * lax.rsqrt(var + EPS)
    return y * gamma + beta


# ---------------------------------------------------------------------------
# Edge kernel: per edge-row-tile, concat [x_i | x_j | e] -> [TE, 96], run the
# fused edge MLP + LayerNorm, emit the pre-residual message (f32, needed for
# aggregation) and msg + edge_attr (fused edge residual).
# ---------------------------------------------------------------------------
def edge_kernel(x_i_ref, x_j_ref, e_ref, w_ref, v_ref, msg_ref, enew_ref):
    cdt = w_ref.dtype
    e_attr = e_ref[...]                                   # [TE, L] f32
    feat = jnp.concatenate(
        [x_i_ref[...].astype(cdt), x_j_ref[...].astype(cdt), e_attr.astype(cdt)],
        axis=-1)                                          # [TE, 3L]
    msg = _mlp_ln(feat, w_ref, v_ref, 3 * LATENT)         # [TE, L] f32
    msg_ref[...] = msg
    enew_ref[...] = msg + e_attr                          # fused edge residual


# ---------------------------------------------------------------------------
# Node kernel: per node-row-tile, concat [x | agg] -> [TN, 64], run the fused
# node MLP + LayerNorm, write node_mlp(...) + x (fused node residual).
# ---------------------------------------------------------------------------
def node_kernel(x_ref, agg_ref, w_ref, v_ref, out_ref):
    cdt = w_ref.dtype
    x = x_ref[...]                                        # [TN, L] f32
    feat = jnp.concatenate([x.astype(cdt), agg_ref[...].astype(cdt)], axis=-1)
    upd = _mlp_ln(feat, w_ref, v_ref, 2 * LATENT)
    out_ref[...] = upd + x                                # fused node residual


# ---------------------------------------------------------------------------
# pallas_call wrappers (row-tiled 1-D grids; weight stacks are tiny residents)
# ---------------------------------------------------------------------------
def _edge_call(x_i, x_j, ea, W, V, te):
    e_rows = ea.shape[0]
    tiled = lambda i: (i, 0)
    resident = lambda i: (0, 0)
    return pl.pallas_call(
        edge_kernel,
        grid=(e_rows // te,),
        in_specs=[
            pl.BlockSpec((te, LATENT), tiled),      # x_i  (compute dtype)
            pl.BlockSpec((te, LATENT), tiled),      # x_j  (compute dtype)
            pl.BlockSpec((te, LATENT), tiled),      # edge_attr (f32)
            pl.BlockSpec(W.shape, resident),        # packed weights
            pl.BlockSpec(V.shape, resident),        # packed bias/gamma/beta
        ],
        out_specs=(pl.BlockSpec((te, LATENT), tiled),
                   pl.BlockSpec((te, LATENT), tiled)),
        out_shape=(jax.ShapeDtypeStruct((e_rows, LATENT), jnp.float32),
                   jax.ShapeDtypeStruct((e_rows, LATENT), jnp.float32)),
        input_output_aliases={2: 1},                # edge_attr buffer -> enew
        compiler_params=_COMPILER_PARAMS,
    )(x_i, x_j, ea, W, V)


def _node_call(x, agg, W, V, tn):
    n_rows = x.shape[0]
    tiled = lambda i: (i, 0)
    resident = lambda i: (0, 0)
    return pl.pallas_call(
        node_kernel,
        grid=(n_rows // tn,),
        in_specs=[
            pl.BlockSpec((tn, LATENT), tiled),      # x (f32)
            pl.BlockSpec((tn, LATENT), tiled),      # aggregated messages (f32)
            pl.BlockSpec(W.shape, resident),
            pl.BlockSpec(V.shape, resident),
        ],
        out_specs=pl.BlockSpec((tn, LATENT), tiled),
        out_shape=jax.ShapeDtypeStruct((n_rows, LATENT), jnp.float32),
        input_output_aliases={0: 0},                # x buffer -> x_updated
        compiler_params=_COMPILER_PARAMS,
    )(x, agg, W, V)


# ---------------------------------------------------------------------------
# Parameter packing: one [K_total, 32] weight stack + one [8, 32] vector stack
# per MLP (2 resident kernel inputs instead of 12).
# ---------------------------------------------------------------------------
def _pack_mlp_params(p, n_cat, w_dtype):
    names = ('w1a', 'w1b', 'w1c')[:n_cat]
    w1 = jnp.concatenate([p[nm] for nm in names], axis=0)       # [n_cat*L, L]
    W = jnp.concatenate([w1, p['w2'], p['w3'], p['w4']], axis=0)
    V = jnp.concatenate([p['b1'], p['b2'], p['b3'], p['b4'],
                         p['gamma'], p['beta'],
                         jnp.zeros((2, LATENT), jnp.float32)], axis=0)
    return W.astype(w_dtype), V.astype(jnp.float32)


# ---------------------------------------------------------------------------
# Processor forward: sort edges by destination once (CSR-style), pad rows to
# tile multiples, run all GraphNetBlocks, slice padding / un-permute at the
# end.  Padded edges gather node 0 but are never aggregated; padded node rows
# are never referenced by real edges.
# ---------------------------------------------------------------------------
def processor_forward(params_list, x, edge_attr, edge_index,
                      tile_n=1024, tile_e=1024, compute_dtype=jnp.bfloat16):
    f32 = jnp.float32
    n_nodes, n_edges = x.shape[0], edge_attr.shape[0]
    tn = _choose_tile(n_nodes, tile_n)
    te = _choose_tile(n_edges, tile_e)
    n_pad = _round_up(n_nodes, tn)
    e_pad = _round_up(n_edges, te)

    src = edge_index[0].astype(jnp.int32)
    dst = edge_index[1].astype(jnp.int32)
    perm = jnp.argsort(dst)            # sort edges by destination (CSR-style)
    inv_perm = jnp.argsort(perm)
    src_s = src[perm]
    dst_s = dst[perm]

    pad_e = e_pad - n_edges
    zero_idx = jnp.zeros((pad_e,), jnp.int32)
    src_g = jnp.concatenate([src_s, zero_idx])      # padded gather indices
    dst_g = jnp.concatenate([dst_s, zero_idx])

    x_p = jnp.pad(x.astype(f32), ((0, n_pad - n_nodes), (0, 0)))
    ea_p = jnp.pad(edge_attr.astype(f32)[perm], ((0, pad_e), (0, 0)))

    packed = [(_pack_mlp_params(p['edge'], 3, compute_dtype),
               _pack_mlp_params(p['node'], 2, compute_dtype))
              for p in params_list]

    for (We, Ve), (Wn, Vn) in packed:
        # nn.Dropout is the identity in eval mode (deterministic forward).
        # Exact XLA row gather (off the MXU), streamed to the kernel in the
        # compute dtype (bf16 halves HBM/VMEM traffic in the perf mode).
        x_i = jnp.take(x_p, dst_g, axis=0).astype(compute_dtype)   # [E_pad, L]
        x_j = jnp.take(x_p, src_g, axis=0).astype(compute_dtype)   # [E_pad, L]
        msg, ea_p = _edge_call(x_i, x_j, ea_p, We, Ve, te)
        # Scatter-add aggregation over dst-sorted messages (f32, exact order
        # of the reference up to summation order).
        agg = jax.ops.segment_sum(msg[:n_edges], dst_s, num_segments=n_pad,
                                  indices_are_sorted=True)
        x_p = _node_call(x_p, agg, Wn, Vn, tn)

    return x_p[:n_nodes], ea_p[:n_edges][inv_perm]


# ---------------------------------------------------------------------------
# Deterministic parameter init (PyTorch-Linear-style uniform)
# ---------------------------------------------------------------------------
def _init_linear(key, fan_in, fan_out):
    kw, kb = jax.random.split(key)
    bound = 1.0 / jnp.sqrt(jnp.float32(fan_in))
    w = jax.random.uniform(kw, (fan_in, fan_out), jnp.float32, -bound, bound)
    b = jax.random.uniform(kb, (1, fan_out), jnp.float32, -bound, bound)
    return w, b


def _init_mlp_ln(key, n_cat_inputs):
    keys = jax.random.split(key, 4)
    in_size = n_cat_inputs * LATENT
    w1, b1 = _init_linear(keys[0], in_size, LATENT)
    chunks = [w1[i * LATENT:(i + 1) * LATENT] for i in range(n_cat_inputs)]
    w2, b2 = _init_linear(keys[1], LATENT, LATENT)
    w3, b3 = _init_linear(keys[2], LATENT, LATENT)
    w4, b4 = _init_linear(keys[3], LATENT, LATENT)
    p = {'b1': b1, 'w2': w2, 'b2': b2, 'w3': w3, 'b3': b3, 'w4': w4, 'b4': b4,
         'gamma': jnp.ones((1, LATENT), jnp.float32),
         'beta': jnp.zeros((1, LATENT), jnp.float32)}
    names = ['w1a', 'w1b', 'w1c'][:n_cat_inputs]
    for nm, c in zip(names, chunks):
        p[nm] = c
    return p


def init_processor_params(key, num_steps):
    params = []
    for i in range(num_steps):
        ke, kn = jax.random.split(jax.random.fold_in(key, i))
        params.append({'edge': _init_mlp_ln(ke, 3), 'node': _init_mlp_ln(kn, 2)})
    return params


# ---------------------------------------------------------------------------
# Pure-JAX reference (for correctness check)
# ---------------------------------------------------------------------------
def _ref_mlp_ln(first_layer_terms, weights):
    (b1, w2, b2, w3, b3, w4, b4, gamma, beta) = weights
    h = b1
    for xv, w in first_layer_terms:
        h = h + jnp.dot(xv, w)
    h = jnp.maximum(h, 0.0)
    h = jnp.maximum(jnp.dot(h, w2) + b2, 0.0)
    h = jnp.maximum(jnp.dot(h, w3) + b3, 0.0)
    h = jnp.dot(h, w4) + b4
    mean = jnp.mean(h, axis=-1, keepdims=True)
    var = jnp.mean((h - mean) ** 2, axis=-1, keepdims=True)
    y = (h - mean) * lax.rsqrt(var + EPS)
    return y * gamma + beta


def _ref_block(params, x, edge_attr, edge_index):
    src, dst = edge_index[0], edge_index[1]
    pe = params['edge']
    msg = _ref_mlp_ln(
        [(x[dst], pe['w1a']), (x[src], pe['w1b']), (edge_attr, pe['w1c'])],
        (pe['b1'], pe['w2'], pe['b2'], pe['w3'], pe['b3'], pe['w4'], pe['b4'],
         pe['gamma'], pe['beta']))
    agg = jax.ops.segment_sum(msg, dst, num_segments=x.shape[0])
    pn = params['node']
    x_upd = _ref_mlp_ln(
        [(x, pn['w1a']), (agg, pn['w1b'])],
        (pn['b1'], pn['w2'], pn['b2'], pn['w3'], pn['b3'], pn['w4'], pn['b4'],
         pn['gamma'], pn['beta']))
    return x_upd + x, msg + edge_attr


def _ref_processor(params_list, x, edge_attr, edge_index):
    for p in params_list:
        x, edge_attr = _ref_block(p, x, edge_attr, edge_index)
    return x, edge_attr


# ---------------------------------------------------------------------------
if __name__ == "__main__":
    num_nodes = 24
    num_edges = 40
    num_steps = 2

    key = jax.random.PRNGKey(0)
    kx, ke, ki, kp = jax.random.split(key, 4)

    x = jax.random.normal(kx, (num_nodes, LATENT), jnp.float32)
    edge_attr = jax.random.normal(ke, (num_edges, LATENT), jnp.float32)
    edge_index = jax.random.randint(ki, (2, num_edges), 0, num_nodes, jnp.int32)

    params = init_processor_params(kp, num_steps)
    x_ref, e_ref = _ref_processor(params, x, edge_attr, edge_index)

    # f32 compute mode with small tiles: exercises the multi-tile grid and
    # padding paths; checked tightly against the pure-JAX reference.
    x32, e32 = processor_forward(params, x, edge_attr, edge_index,
                                 tile_n=8, tile_e=16,
                                 compute_dtype=jnp.float32)
    jax.block_until_ready((x32, e32))
    assert jnp.allclose(x32, x_ref, rtol=2e-3, atol=2e-3), \
        float(jnp.max(jnp.abs(x32 - x_ref)))
    assert jnp.allclose(e32, e_ref, rtol=2e-3, atol=2e-3), \
        float(jnp.max(jnp.abs(e32 - e_ref)))

    # bf16 MXU-operand mode (perf default, f32 accumulation / LayerNorm).
    # Looser tolerance: bf16 operand rounding over 2 message-passing steps.
    xbf, ebf = processor_forward(params, x, edge_attr, edge_index,
                                 compute_dtype=jnp.bfloat16)
    jax.block_until_ready((xbf, ebf))
    assert jnp.allclose(xbf, x_ref, rtol=1e-1, atol=1e-1), \
        float(jnp.max(jnp.abs(xbf - x_ref)))
    assert jnp.allclose(ebf, e_ref, rtol=1e-1, atol=1e-1), \
        float(jnp.max(jnp.abs(ebf - e_ref)))

    print("KERNEL_OK")
</pallas_src>

<mosaic_0001>
module attributes {stable_mosaic.version = 11 : i64} {
  func.func @edge_kernel(%arg0: i32, %arg1: memref<16x32xf32, #tpu.memory_space<vmem>>, %arg2: memref<16x32xf32, #tpu.memory_space<vmem>>, %arg3: memref<16x32xf32, #tpu.memory_space<vmem>>, %arg4: memref<192x32xf32, #tpu.memory_space<vmem>>, %arg5: memref<8x32xf32, #tpu.memory_space<vmem>>, %arg6: memref<16x32xf32, #tpu.memory_space<vmem>>, %arg7: memref<16x32xf32, #tpu.memory_space<vmem>>) attributes {dimension_semantics = [#tpu.dimension_semantics<parallel>], iteration_bounds = array<i64: 3>, scalar_prefetch = 0 : i64, scratch_operands = 0 : i64, tpu.core_type = #tpu.core_type<tc>, window_params = [{transform_indices = @transform_0, window_bounds = array<i64: 16, 32>}, {transform_indices = @transform_1, window_bounds = array<i64: 16, 32>}, {transform_indices = @transform_2, window_bounds = array<i64: 16, 32>}, {pipeline_mode = #tpu.pipeline_mode<synchronous>, transform_indices = @transform_3, window_bounds = array<i64: 192, 32>}, {pipeline_mode = #tpu.pipeline_mode<synchronous>, transform_indices = @transform_4, window_bounds = array<i64: 8, 32>}, {transform_indices = @transform_5, window_bounds = array<i64: 16, 32>}, {transform_indices = @transform_6, window_bounds = array<i64: 16, 32>}]} {
    %c0 = arith.constant 0 : index
    %c0_0 = arith.constant 0 : index
    %0 = vector.load %arg3[%c0, %c0_0] : memref<16x32xf32, #tpu.memory_space<vmem>>, vector<16x32xf32>
    %c0_1 = arith.constant 0 : index
    %c0_2 = arith.constant 0 : index
    %1 = vector.load %arg1[%c0_1, %c0_2] : memref<16x32xf32, #tpu.memory_space<vmem>>, vector<16x32xf32>
    %c0_3 = arith.constant 0 : index
    %c0_4 = arith.constant 0 : index
    %2 = vector.load %arg2[%c0_3, %c0_4] : memref<16x32xf32, #tpu.memory_space<vmem>>, vector<16x32xf32>
    %3 = tpu.concatenate %1, %2, %0 in 1 : vector<16x32xf32>, vector<16x32xf32>, vector<16x32xf32> -> vector<16x96xf32>
    %c0_5 = arith.constant 0 : index
    %c0_6 = arith.constant 0 : index
    %4 = vector.load %arg4[%c0_5, %c0_6] : memref<192x32xf32, #tpu.memory_space<vmem>>, vector<96x32xf32>
    %c96 = arith.constant 96 : index
    %c0_7 = arith.constant 0 : index
    %5 = vector.load %arg4[%c96, %c0_7] : memref<192x32xf32, #tpu.memory_space<vmem>>, vector<32x32xf32>
    %c128 = arith.constant 128 : index
    %c0_8 = arith.constant 0 : index
    %6 = vector.load %arg4[%c128, %c0_8] : memref<192x32xf32, #tpu.memory_space<vmem>>, vector<32x32xf32>
    %c160 = arith.constant 160 : index
    %c0_9 = arith.constant 0 : index
    %7 = vector.load %arg4[%c160, %c0_9] : memref<192x32xf32, #tpu.memory_space<vmem>>, vector<32x32xf32>
    %c0_10 = arith.constant 0 : index
    %c0_11 = arith.constant 0 : index
    %8 = vector.load %arg5[%c0_10, %c0_11] : memref<8x32xf32, #tpu.memory_space<vmem>>, vector<1x32xf32>
    %c1 = arith.constant 1 : index
    %c0_12 = arith.constant 0 : index
    %9 = vector.load %arg5[%c1, %c0_12] : memref<8x32xf32, #tpu.memory_space<vmem>>, vector<1x32xf32>
    %c2 = arith.constant 2 : index
    %c0_13 = arith.constant 0 : index
    %10 = vector.load %arg5[%c2, %c0_13] : memref<8x32xf32, #tpu.memory_space<vmem>>, vector<1x32xf32>
    %c3 = arith.constant 3 : index
    %c0_14 = arith.constant 0 : index
    %11 = vector.load %arg5[%c3, %c0_14] : memref<8x32xf32, #tpu.memory_space<vmem>>, vector<1x32xf32>
    %c4 = arith.constant 4 : index
    %c0_15 = arith.constant 0 : index
    %12 = vector.load %arg5[%c4, %c0_15] : memref<8x32xf32, #tpu.memory_space<vmem>>, vector<1x32xf32>
    %c5 = arith.constant 5 : index
    %c0_16 = arith.constant 0 : index
    %13 = vector.load %arg5[%c5, %c0_16] : memref<8x32xf32, #tpu.memory_space<vmem>>, vector<1x32xf32>
    %cst = arith.constant dense<0.000000e+00> : vector<16x32xf32>
    %14 = tpu.matmul %3, %4, %cst {dimension_numbers = #tpu.dot_dimension_numbers<[1], [0], [0], [1], [0, 0, 1, 1], [], []>} : vector<16x96xf32>, vector<96x32xf32>, vector<16x32xf32> -> vector<16x32xf32>
    %15 = vector.broadcast %8 : vector<1x32xf32> to vector<16x32xf32>
    %16 = arith.addf %14, %15 : vector<16x32xf32>
    %cst_17 = arith.constant 0.000000e+00 : f32
    %17 = vector.broadcast %cst_17 : f32 to vector<16x32xf32>
    %18 = arith.maximumf %16, %17 : vector<16x32xf32>
    %cst_18 = arith.constant dense<0.000000e+00> : vector<16x32xf32>
    %19 = tpu.matmul %18, %5, %cst_18 {dimension_numbers = #tpu.dot_dimension_numbers<[1], [0], [0], [1], [0, 0, 1, 1], [], []>} : vector<16x32xf32>, vector<32x32xf32>, vector<16x32xf32> -> vector<16x32xf32>
    %20 = vector.broadcast %9 : vector<1x32xf32> to vector<16x32xf32>
    %21 = arith.addf %19, %20 : vector<16x32xf32>
    %cst_19 = arith.constant 0.000000e+00 : f32
    %22 = vector.broadcast %cst_19 : f32 to vector<16x32xf32>
    %23 = arith.maximumf %21, %22 : vector<16x32xf32>
    %cst_20 = arith.constant dense<0.000000e+00> : vector<16x32xf32>
    %24 = tpu.matmul %23, %6, %cst_20 {dimension_numbers = #tpu.dot_dimension_numbers<[1], [0], [0], [1], [0, 0, 1, 1], [], []>} : vector<16x32xf32>, vector<32x32xf32>, vector<16x32xf32> -> vector<16x32xf32>
    %25 = vector.broadcast %10 : vector<1x32xf32> to vector<16x32xf32>
    %26 = arith.addf %24, %25 : vector<16x32xf32>
    %cst_21 = arith.constant 0.000000e+00 : f32
    %27 = vector.broadcast %cst_21 : f32 to vector<16x32xf32>
    %28 = arith.maximumf %26, %27 : vector<16x32xf32>
    %cst_22 = arith.constant dense<0.000000e+00> : vector<16x32xf32>
    %29 = tpu.matmul %28, %7, %cst_22 {dimension_numbers = #tpu.dot_dimension_numbers<[1], [0], [0], [1], [0, 0, 1, 1], [], []>} : vector<16x32xf32>, vector<32x32xf32>, vector<16x32xf32> -> vector<16x32xf32>
    %30 = vector.broadcast %11 : vector<1x32xf32> to vector<16x32xf32>
    %31 = arith.addf %29, %30 : vector<16x32xf32>
    %cst_23 = arith.constant dense<0.000000e+00> : vector<16xf32>
    %32 = vector.multi_reduction <add>, %31, %cst_23 [1] : vector<16x32xf32> to vector<16xf32>
    %33 = vector.shape_cast %32 : vector<16xf32> to vector<16x1xf32>
    %cst_24 = arith.constant 3.200000e+01 : f32
    %34 = vector.broadcast %cst_24 : f32 to vector<16x1xf32>
    %35 = arith.divf %33, %34 : vector<16x1xf32>
    %36 = vector.broadcast %35 : vector<16x1xf32> to vector<16x32xf32>
    %37 = arith.subf %31, %36 : vector<16x32xf32>
    %38 = arith.mulf %37, %37 : vector<16x32xf32>
    %cst_25 = arith.constant dense<0.000000e+00> : vector<16xf32>
    %39 = vector.multi_reduction <add>, %38, %cst_25 [1] : vector<16x32xf32> to vector<16xf32>
    %40 = vector.shape_cast %39 : vector<16xf32> to vector<16x1xf32>
    %cst_26 = arith.constant 3.200000e+01 : f32
    %41 = vector.broadcast %cst_26 : f32 to vector<16x1xf32>
    %42 = arith.divf %40, %41 : vector<16x1xf32>
    %43 = vector.broadcast %35 : vector<16x1xf32> to vector<16x32xf32>
    %44 = arith.subf %31, %43 : vector<16x32xf32>
    %cst_27 = arith.constant 9.99999974E-6 : f32
    %45 = vector.broadcast %cst_27 : f32 to vector<16x1xf32>
    %46 = arith.addf %42, %45 : vector<16x1xf32>
    %47 = math.rsqrt %46 : vector<16x1xf32>
    %48 = vector.broadcast %47 : vector<16x1xf32> to vector<16x32xf32>
    %49 = arith.mulf %44, %48 : vector<16x32xf32>
    %50 = vector.broadcast %12 : vector<1x32xf32> to vector<16x32xf32>
    %51 = arith.mulf %49, %50 : vector<16x32xf32>
    %52 = vector.broadcast %13 : vector<1x32xf32> to vector<16x32xf32>
    %53 = arith.addf %51, %52 : vector<16x32xf32>
    %c0_28 = arith.constant 0 : index
    %c0_29 = arith.constant 0 : index
    %54 = vector.load %arg6[%c0_28, %c0_29] : memref<16x32xf32, #tpu.memory_space<vmem>>, vector<16x32xf32>
    tpu.vector_store %arg6[%c0_28, %c0_29], %53 {strides = array<i32>} : memref<16x32xf32, #tpu.memory_space<vmem>>, vector<16x32xf32>,
    %55 = arith.addf %53, %0 : vector<16x32xf32>
    %c0_30 = arith.constant 0 : index
    %c0_31 = arith.constant 0 : index
    %56 = vector.load %arg7[%c0_30, %c0_31] : memref<16x32xf32, #tpu.memory_space<vmem>>, vector<16x32xf32>
    tpu.vector_store %arg7[%c0_30, %c0_31], %55 {strides = array<i32>} : memref<16x32xf32, #tpu.memory_space<vmem>>, vector<16x32xf32>,
    return
  }
  func.func @transform_0(%arg0: i32) -> (i32, i32) {
    %c0_i32 = arith.constant 0 : i32
    %c0_i32_0 = arith.constant 0 : i32
    return %arg0, %c0_i32 : i32, i32
  }
  func.func @transform_1(%arg0: i32) -> (i32, i32) {
    %c0_i32 = arith.constant 0 : i32
    %c0_i32_0 = arith.constant 0 : i32
    return %arg0, %c0_i32 : i32, i32
  }
  func.func @transform_2(%arg0: i32) -> (i32, i32) {
    %c0_i32 = arith.constant 0 : i32
    %c0_i32_0 = arith.constant 0 : i32
    return %arg0, %c0_i32 : i32, i32
  }
  func.func @transform_3(%arg0: i32) -> (i32, i32) {
    %c0_i32 = arith.constant 0 : i32
    %c0_i32_0 = arith.constant 0 : i32
    %c0_i32_1 = arith.constant 0 : i32
    return %c0_i32, %c0_i32_0 : i32, i32
  }
  func.func @transform_4(%arg0: i32) -> (i32, i32) {
    %c0_i32 = arith.constant 0 : i32
    %c0_i32_0 = arith.constant 0 : i32
    %c0_i32_1 = arith.constant 0 : i32
    return %c0_i32, %c0_i32_0 : i32, i32
  }
  func.func @transform_5(%arg0: i32) -> (i32, i32) {
    %c0_i32 = arith.constant 0 : i32
    %c0_i32_0 = arith.constant 0 : i32
    return %arg0, %c0_i32 : i32, i32
  }
  func.func @transform_6(%arg0: i32) -> (i32, i32) {
    %c0_i32 = arith.constant 0 : i32
    %c0_i32_0 = arith.constant 0 : i32
    return %arg0, %c0_i32 : i32, i32
  }
}

</mosaic_0001>

<llo_original>
// kernel: tpu_custom_call.1
$region0: #{tpu_custom_call.1}
  #allocation0 [shape = 'u32[]', space=smem, size = 0x4, offset = 0x4, fixed_abs, tag = 'smem constant byte address 0x4 - core index']
  #allocation1 [shape = 'u32[144,128]{1,0:T(1,128)}', space=vmem, size = 0x12000, scoped, tag = 'internal scratch']
  %s0 = inlined_call_operand.vmem [shape: f32[48,32], index: 0, kind: input, shape index: {}]
  %s1 = inlined_call_operand.vmem [shape: f32[48,32], index: 1, kind: input, shape index: {}]
  %s2 = inlined_call_operand.vmem [shape: f32[48,32], index: 2, kind: input, shape index: {}, may-alias: {2,6}]
  %s3 = inlined_call_operand.vmem [shape: f32[192,32], index: 3, kind: input, shape index: {}]
  %s4 = inlined_call_operand.vmem [shape: f32[8,32], index: 4, kind: input, shape index: {}]
  %s5 = inlined_call_operand.vmem [shape: f32[48,32], index: 5, kind: output, shape index: {0}]
  %s6 = inlined_call_operand.vmem [shape: f32[48,32], index: 6, kind: output, shape index: {1}, may-alias: {2,6}]
  %7 = xla_tuple %s5, %s6
  %s8 = sld [smem:[#allocation0]]
  $region61: #{tpu_custom_call.1} parent=0
    _
  %s10 = ssub.s32 1, %s8
  %s11 = scalar_select 0, %s10, %s8
  loop: start=0, step=1, limit=5
  $region2: #{tpu_custom_call.1} parent=0 // loop_pre_header
    _
  $region3: #{tpu_custom_call.1} parent=0 // loop_header
    %s13 = sphi 0, %s17
    %p14 = scmp.ge.s32.totalorder %s13, 5
    %s23 = sphi 0, %s25
    %s26 = sphi 0, %s23
    %s27 = sphi 0, %s26
    %s43 = sphi 0, %s27
    %s49 = sphi 0, %s51
    %s52 = sphi 0, %s49
    %s53 = sphi 0, %s52
    %s69 = sphi 0, %s53
    %s75 = sphi 0, %s77
    %s78 = sphi 0, %s75
    %s79 = sphi 0, %s78
    %s95 = sphi 0, %s79
    %s99 = sphi 0, %s99
    %s101 = sphi 0, %s99
    %s102 = sphi 0, %s101
    %s116 = sphi 0, %s102
    %s120 = sphi 0, %s120
    %s122 = sphi 0, %s120
    %s123 = sphi 0, %s122
    %s137 = sphi 0, %s123
    %s143 = sphi 0, %s145
    %s146 = sphi 0, %s143
    %s147 = sphi 0, %s146
    %s163 = sphi 0, %s147
    %s169 = sphi 0, %s171
    %s172 = sphi 0, %s169
    %s173 = sphi 0, %s172
    %s189 = sphi 0, %s173
  $region4: #{tpu_custom_call.1} parent=0 // loop_header_branch
    %16 = sbr.rel (%p14) target = $region8
  $region5: #{tpu_custom_call.1} parent=0 // loop_body
    %s18 = ssub.s32 %s13, 1
    %s19 = ssub.s32 %s13, 2
    %s20 = sadd.s32 %s13, 1
    %s21 = ssub.s32 %s13, %s20
    %p22 = scmp.eq.s32.totalorder %s21, 0
    %s24 = sadd.s32 %s23, 1
    %s25 = scalar_select %p22, %s23, %s24
    %p28 = pneg %p22
    %p29 = scmp.eq.s32.totalorder %s13, 2
    %p30 = por %p28, %p29
    %p31 = scmp.ne.s32.totalorder %s23, %s26
    %p32 = scmp.eq.s32.totalorder %s13, 0
    %p33 = por %p31, %p32
    %p34 = scmp.ne.s32.totalorder %s23, %s26
    %p35 = scmp.eq.s32.totalorder %s18, 2
    %p36 = por %p34, %p35
    %p37 = scmp.ne.s32.totalorder %s26, %s27
    %p38 = scmp.eq.s32.totalorder %s18, 0
    %p39 = por %p37, %p38
    %p40 = scmp.ne.s32.totalorder %s26, %s27
    %p41 = scmp.eq.s32.totalorder %s19, 2
    %p42 = por %p40, %p41
    %p44 = scmp.ne.s32.totalorder %s27, %s43
    %p45 = scmp.eq.s32.totalorder %s19, 0
    %p46 = por %p44, %p45
    %s47 = ssub.s32 %s13, %s20
    %p48 = scmp.eq.s32.totalorder %s47, 0
    %s50 = sadd.s32 %s49, 1
    %s51 = scalar_select %p48, %s49, %s50
    %p54 = pneg %p48
    %p55 = scmp.eq.s32.totalorder %s13, 2
    %p56 = por %p54, %p55
    %p57 = scmp.ne.s32.totalorder %s49, %s52
    %p58 = scmp.eq.s32.totalorder %s13, 0
    %p59 = por %p57, %p58
    %p60 = scmp.ne.s32.totalorder %s49, %s52
    %p61 = scmp.eq.s32.totalorder %s18, 2
    %p62 = por %p60, %p61
    %p63 = scmp.ne.s32.totalorder %s52, %s53
    %p64 = scmp.eq.s32.totalorder %s18, 0
    %p65 = por %p63, %p64
    %p66 = scmp.ne.s32.totalorder %s52, %s53
    %p67 = scmp.eq.s32.totalorder %s19, 2
    %p68 = por %p66, %p67
    %p70 = scmp.ne.s32.totalorder %s53, %s69
    %p71 = scmp.eq.s32.totalorder %s19, 0
    %p72 = por %p70, %p71
    %s73 = ssub.s32 %s13, %s20
    %p74 = scmp.eq.s32.totalorder %s73, 0
    %s76 = sadd.s32 %s75, 1
    %s77 = scalar_select %p74, %s75, %s76
    %p80 = pneg %p74
    %p81 = scmp.eq.s32.totalorder %s13, 2
    %p82 = por %p80, %p81
    %p83 = scmp.ne.s32.totalorder %s75, %s78
    %p84 = scmp.eq.s32.totalorder %s13, 0
    %p85 = por %p83, %p84
    %p86 = scmp.ne.s32.totalorder %s75, %s78
    %p87 = scmp.eq.s32.totalorder %s18, 2
    %p88 = por %p86, %p87
    %p89 = scmp.ne.s32.totalorder %s78, %s79
    %p90 = scmp.eq.s32.totalorder %s18, 0
    %p91 = por %p89, %p90
    %p92 = scmp.ne.s32.totalorder %s78, %s79
    %p93 = scmp.eq.s32.totalorder %s19, 2
    %p94 = por %p92, %p93
    %p96 = scmp.ne.s32.totalorder %s79, %s95
    %p97 = scmp.eq.s32.totalorder %s19, 0
    %p98 = por %p96, %p97
    %s100 = sadd.s32 %s99, 1
    %p103 = scmp.eq.s32.totalorder %s13, 2
    %p104 = scmp.ne.s32.totalorder %s99, %s101
    %p105 = scmp.eq.s32.totalorder %s13, 0
    %p106 = por %p104, %p105
    %p107 = scmp.ne.s32.totalorder %s99, %s101
    %p108 = scmp.eq.s32.totalorder %s18, 2
    %p109 = por %p107, %p108
    %p110 = scmp.ne.s32.totalorder %s101, %s102
    %p111 = scmp.eq.s32.totalorder %s18, 0
    %p112 = por %p110, %p111
    %p113 = scmp.ne.s32.totalorder %s101, %s102
    %p114 = scmp.eq.s32.totalorder %s19, 2
    %p115 = por %p113, %p114
    %p117 = scmp.ne.s32.totalorder %s102, %s116
    %p118 = scmp.eq.s32.totalorder %s19, 0
    %p119 = por %p117, %p118
    %s121 = sadd.s32 %s120, 1
    %p124 = scmp.eq.s32.totalorder %s13, 2
    %p125 = scmp.ne.s32.totalorder %s120, %s122
    %p126 = scmp.eq.s32.totalorder %s13, 0
    %p127 = por %p125, %p126
    %p128 = scmp.ne.s32.totalorder %s120, %s122
    %p129 = scmp.eq.s32.totalorder %s18, 2
    %p130 = por %p128, %p129
    %p131 = scmp.ne.s32.totalorder %s122, %s123
    %p132 = scmp.eq.s32.totalorder %s18, 0
    %p133 = por %p131, %p132
    %p134 = scmp.ne.s32.totalorder %s122, %s123
    %p135 = scmp.eq.s32.totalorder %s19, 2
    %p136 = por %p134, %p135
    %p138 = scmp.ne.s32.totalorder %s123, %s137
    %p139 = scmp.eq.s32.totalorder %s19, 0
    %p140 = por %p138, %p139
    %s141 = ssub.s32 %s13, %s20
    %p142 = scmp.eq.s32.totalorder %s141, 0
    %s144 = sadd.s32 %s143, 1
    %s145 = scalar_select %p142, %s143, %s144
    %p148 = pneg %p142
    %p149 = scmp.eq.s32.totalorder %s13, 2
    %p150 = por %p148, %p149
    %p151 = scmp.ne.s32.totalorder %s143, %s146
    %p152 = scmp.eq.s32.totalorder %s13, 0
    %p153 = por %p151, %p152
    %p154 = scmp.ne.s32.totalorder %s143, %s146
    %p155 = scmp.eq.s32.totalorder %s18, 2
    %p156 = por %p154, %p155
    %p157 = scmp.ne.s32.totalorder %s146, %s147
    %p158 = scmp.eq.s32.totalorder %s18, 0
    %p159 = por %p157, %p158
    %p160 = scmp.ne.s32.totalorder %s146, %s147
    %p161 = scmp.eq.s32.totalorder %s19, 2
    %p162 = por %p160, %p161
    %p164 = scmp.ne.s32.totalorder %s147, %s163
    %p165 = scmp.eq.s32.totalorder %s19, 0
    %p166 = por %p164, %p165
    %s167 = ssub.s32 %s13, %s20
    %p168 = scmp.eq.s32.totalorder %s167, 0
    %s170 = sadd.s32 %s169, 1
    %s171 = scalar_select %p168, %s169, %s170
    %p174 = pneg %p168
    %p175 = scmp.eq.s32.totalorder %s13, 2
    %p176 = por %p174, %p175
    %p177 = scmp.ne.s32.totalorder %s169, %s172
    %p178 = scmp.eq.s32.totalorder %s13, 0
    %p179 = por %p177, %p178
    %p180 = scmp.ne.s32.totalorder %s169, %s172
    %p181 = scmp.eq.s32.totalorder %s18, 2
    %p182 = por %p180, %p181
    %p183 = scmp.ne.s32.totalorder %s172, %s173
    %p184 = scmp.eq.s32.totalorder %s18, 0
    %p185 = por %p183, %p184
    %p186 = scmp.ne.s32.totalorder %s172, %s173
    %p187 = scmp.eq.s32.totalorder %s19, 2
    %p188 = por %p186, %p187
    %p190 = scmp.ne.s32.totalorder %s173, %s189
    %p191 = scmp.eq.s32.totalorder %s19, 0
    %p192 = por %p190, %p191
    %p193 = scmp.le.s32.totalorder 1, %s13
    %p194 = scmp.lt.s32.totalorder %s13, 4
    %p195 = pnand %p193, %p194
    %p196 = pneg %p195
    // Predicated region
    $region9: #{tpu_custom_call.1} parent=5 // pred_check
      _
    $region10: #{tpu_custom_call.1} parent=5 // pred_check_branch
      %198 = sbr.rel (%p195) target = $region12
    $region11: #{tpu_custom_call.1} parent=5 // pred_region
      %s199 = ssub.s32 %s13, 1
      // Predicated region
      $region13: #{tpu_custom_call.1} parent=11 // pred_check
        %p200 = pneg %p112
      $region14: #{tpu_custom_call.1} parent=11 // pred_check_branch
        %202 = sbr.rel (%p200) target = $region16
      $region15: #{tpu_custom_call.1} parent=11 // pred_region
        _
      $region16: #{tpu_custom_call.1} parent=11 // pred_fallthru
        _
      // Predicated region
      $region17: #{tpu_custom_call.1} parent=11 // pred_check
        %p203 = pneg %p133
      $region18: #{tpu_custom_call.1} parent=11 // pred_check_branch
        %205 = sbr.rel (%p203) target = $region20
      $region19: #{tpu_custom_call.1} parent=11 // pred_region
        _
      $region20: #{tpu_custom_call.1} parent=11 // pred_fallthru
        _
    $region12: #{tpu_custom_call.1} parent=5 // pred_fallthru
      _
    %p206 = scmp.lt.s32.totalorder %s13, 3
    // Predicated region
    $region21: #{tpu_custom_call.1} parent=5 // pred_check
      %p207 = pneg %p206
    $region22: #{tpu_custom_call.1} parent=5 // pred_check_branch
      %209 = sbr.rel (%p207) target = $region24
    $region23: #{tpu_custom_call.1} parent=5 // pred_region
      // Predicated region
      $region25: #{tpu_custom_call.1} parent=23 // pred_check
        %p210 = pneg %p33
      $region26: #{tpu_custom_call.1} parent=23 // pred_check_branch
        %212 = sbr.rel (%p210) target = $region28
      $region27: #{tpu_custom_call.1} parent=23 // pred_region
        %s213 = smul.u32 2, %s13
        %p214 = scmp.lt.s32.totalorder %s213, 5
        %s215 = scalar_select %p214, %s213, 5
        %s216 = smul.addr %s215, 8
        %s217 = scalar_lea.vmem %s0, %s216
        %s218 = smul.u32 2, %s13
      $region28: #{tpu_custom_call.1} parent=23 // pred_fallthru
        _
      // Predicated region
      $region29: #{tpu_custom_call.1} parent=23 // pred_check
        %p219 = pneg %p59
      $region30: #{tpu_custom_call.1} parent=23 // pred_check_branch
        %221 = sbr.rel (%p219) target = $region32
      $region31: #{tpu_custom_call.1} parent=23 // pred_region
        %s222 = smul.u32 2, %s13
        %p223 = scmp.lt.s32.totalorder %s222, 5
        %s224 = scalar_select %p223, %s222, 5
        %s225 = smul.addr %s224, 8
        %s226 = scalar_lea.vmem %s1, %s225
        %s227 = smul.u32 2, %s13
      $region32: #{tpu_custom_call.1} parent=23 // pred_fallthru
        _
      // Predicated region
      $region33: #{tpu_custom_call.1} parent=23 // pred_check
        %p228 = pneg %p85
      $region34: #{tpu_custom_call.1} parent=23 // pred_check_branch
        %230 = sbr.rel (%p228) target = $region36
      $region35: #{tpu_custom_call.1} parent=23 // pred_region
        %s231 = smul.u32 2, %s13
        %p232 = scmp.lt.s32.totalorder %s231, 5
        %s233 = scalar_select %p232, %s231, 5
        %s234 = smul.addr %s233, 8
        %s235 = scalar_lea.vmem %s2, %s234
        %s236 = smul.u32 2, %s13
      $region36: #{tpu_custom_call.1} parent=23 // pred_fallthru
        _
    $region24: #{tpu_custom_call.1} parent=5 // pred_fallthru
      _
    %p237 = scmp.le.s32.totalorder 1, %s13
    %p238 = scmp.lt.s32.totalorder %s13, 4
    %p239 = pnand %p237, %p238
    %p240 = pneg %p239
    // Predicated region
    $region37: #{tpu_custom_call.1} parent=5 // pred_check
      _
    $region38: #{tpu_custom_call.1} parent=5 // pred_check_branch
      %242 = sbr.rel (%p239) target = $region40
    $region39: #{tpu_custom_call.1} parent=5 // pred_region
      %s243 = ssub.s32 %s13, 1
      %s244 = smul.u32 2, %s18
      %p245 = scmp.lt.s32.totalorder %s244, 5
      %s246 = scalar_select %p245, %s244, 5
      %s247 = smul.addr %s246, 8
      %s248 = scalar_lea.vmem %s0, %s247
      %p249 = pneg %p39
      %p250 = pneg %p36
      %s251 = smul.u32 2, %s18
      %p252 = scmp.lt.s32.totalorder %s251, 5
      %s253 = scalar_select %p252, %s251, 5
      %s254 = smul.addr %s253, 8
      %s255 = scalar_lea.vmem %s1, %s254
      %p256 = pneg %p65
      %p257 = pneg %p62
      %s258 = smul.u32 2, %s18
      %p259 = scmp.lt.s32.totalorder %s258, 5
      %s260 = scalar_select %p259, %s258, 5
      %s261 = smul.addr %s260, 8
      %s262 = scalar_lea.vmem %s2, %s261
      %p263 = pneg %p91
      %p264 = pneg %p88
      %p265 = pneg %p112
      %p266 = pneg %p109
      %p267 = pneg %p133
      %p268 = pneg %p130
      %p269 = pneg %p159
      %p270 = pneg %p156
      %s271 = smul.u32 2, %s18
      %p272 = scmp.lt.s32.totalorder %s271, 5
      %s273 = scalar_select %p272, %s271, 5
      %s274 = smul.addr %s273, 8
      %s275 = scalar_lea.vmem %s5, %s274
      %p276 = pneg %p185
      %p277 = pneg %p182
      %s278 = smul.u32 2, %s18
      %p279 = scmp.lt.s32.totalorder %s278, 5
      %s280 = scalar_select %p279, %s278, 5
      %s281 = smul.addr %s280, 8
      %s282 = scalar_lea.vmem %s6, %s281
      %s283 = smul.u32 2, %s18
      %p284 = scmp.lt.s32.totalorder %s283, 5
      %s285 = scalar_select %p284, %s283, 5
      %s286 = smul.addr %s285, 8
      %s287 = scalar_lea.vmem %s0, %s286
      %s288 = smul.u32 2, %s18
      %s289 = smul.u32 2, %s18
      %p290 = scmp.lt.s32.totalorder %s289, 5
      %s291 = scalar_select %p290, %s289, 5
      %s292 = smul.addr %s291, 8
      %s293 = scalar_lea.vmem %s1, %s292
      %s294 = smul.u32 2, %s18
      %s295 = smul.u32 2, %s18
      %p296 = scmp.lt.s32.totalorder %s295, 5
      %s297 = scalar_select %p296, %s295, 5
      %s298 = smul.addr %s297, 8
      %s299 = scalar_lea.vmem %s2, %s298
      %s300 = smul.u32 2, %s18
      %s301 = smul.u32 2, %s18
      %p302 = scmp.lt.s32.totalorder %s301, 5
      %s303 = scalar_select %p302, %s301, 5
      %s304 = smul.addr %s303, 8
      %s305 = scalar_lea.vmem %s5, %s304
      %s306 = smul.u32 2, %s18
      %s307 = smul.u32 2, %s18
      %p308 = scmp.lt.s32.totalorder %s307, 5
      %s309 = scalar_select %p308, %s307, 5
      %s310 = smul.addr %s309, 8
      %s311 = scalar_lea.vmem %s6, %s310
      %s312 = smul.u32 2, %s18
      %v313 = vld [vmem:[%s299] sm:$0xff]
      %v314 = vld [vmem:[%s299 + $0x8] sm:$0xff]
      %v315 = vld [vmem:[%s287] sm:$0xff]
      %v316 = vld [vmem:[%s287 + $0x8] sm:$0xff]
      %v317 = vld [vmem:[%s293] sm:$0xff]
      %v318 = vld [vmem:[%s293 + $0x8] sm:$0xff]
      %321 = vrot.lane.b32.xlu0 %v317, 32
      %v322 = vpop.permute.xlu0 %321
      %323 = vrot.lane.b32.xlu0 %v318, 32
      %v324 = vpop.permute.xlu0 %323
      %329 = vrot.lane.b32.xlu0 %v313, 64
      %v330 = vpop.permute.xlu0 %329
      %331 = vrot.lane.b32.xlu0 %v314, 64
      %v332 = vpop.permute.xlu0 %331
      %vm335 = vcmask 261120
      %v336 = vsel %vm335, %v315, %v322
      %v337 = vsel %vm335, %v316, %v324
      %vm338 = vcmask 523264
      %v339 = vsel %vm338, %v336, %v330
      %v340 = vsel %vm338, %v337, %v332
      %v341 = vld [vmem:[%s3] sm:$0xff]
      %v342 = vld [vmem:[%s3 + $0x8] sm:$0xff]
      %v343 = vld [vmem:[%s3 + $0x10] sm:$0xff]
      %v344 = vld [vmem:[%s3 + $0x18] sm:$0xff]
      %v345 = vld [vmem:[%s3 + $0x20] sm:$0xff]
      %v346 = vld [vmem:[%s3 + $0x28] sm:$0xff]
      %v347 = vld [vmem:[%s3 + $0x30] sm:$0xff]
      %v348 = vld [vmem:[%s3 + $0x38] sm:$0xff]
      %v349 = vld [vmem:[%s3 + $0x40] sm:$0xff]
      %v350 = vld [vmem:[%s3 + $0x48] sm:$0xff]
      %v351 = vld [vmem:[%s3 + $0x50] sm:$0xff]
      %v352 = vld [vmem:[%s3 + $0x58] sm:$0xff]
      %v353 = vld [vmem:[%s3 + $0x60] sm:$0xff]
      %v354 = vld [vmem:[%s3 + $0x68] sm:$0xff]
      %v355 = vld [vmem:[%s3 + $0x70] sm:$0xff]
      %v356 = vld [vmem:[%s3 + $0x78] sm:$0xff]
      %v357 = vld [vmem:[%s3 + $0x80] sm:$0xff]
      %v358 = vld [vmem:[%s3 + $0x88] sm:$0xff]
      %v359 = vld [vmem:[%s3 + $0x90] sm:$0xff]
      %v360 = vld [vmem:[%s3 + $0x98] sm:$0xff]
      %v361 = vld [vmem:[%s3 + $0xa0] sm:$0xff]
      %v362 = vld [vmem:[%s3 + $0xa8] sm:$0xff]
      %v363 = vld [vmem:[%s3 + $0xb0] sm:$0xff]
      %v364 = vld [vmem:[%s3 + $0xb8] sm:$0xff]
      %v365 = vld [vmem:[%s4] sm:$0x1]
      %v366 = vld [vmem:[%s4 + $0x1] sm:$0x1]
      %v367 = vld [vmem:[%s4 + $0x2] sm:$0x1]
      %v368 = vld [vmem:[%s4 + $0x3] sm:$0x1]
      %v369 = vld [vmem:[%s4 + $0x4] sm:$0x1]
      %v370 = vld [vmem:[%s4 + $0x5] sm:$0x1]
      %v371 = vlaneseq
      %v372 = vshrl.u32 %v371, 7
      %v373 = vsub.s32 0, %v372
      %v374 = vrot.slane %v365, %v373
      %vm375 = vcmask 785408
      %v377 = vsel %vm375, %v339, 0
      %v380 = vsel %vm375, %v340, 0
      %382 = vmatprep.subr.mxu0 0.0
      %383 = vmatpush1.msra.mxu0 %v341
      %384 = vmatprep.subr.mxu0 0.0
      %385 = vmatpush1.msra.mxu0 %v342
      %386 = vmatprep.subr.mxu0 0.0
      %387 = vmatpush1.msra.mxu0 %v343
      %388 = vmatprep.subr.mxu0 0.0
      %389 = vmatpush1.msra.mxu0 %v344
      %390 = vmatprep.subr.mxu0 0.0
      %391 = vmatpush1.msra.mxu0 %v345
      %392 = vmatprep.subr.mxu0 0.0
      %393 = vmatpush1.msra.mxu0 %v346
      %394 = vmatprep.subr.mxu0 0.0
      %395 = vmatpush1.msra.mxu0 %v347
      %396 = vmatprep.subr.mxu0 0.0
      %397 = vmatpush1.msra.mxu0 %v348
      %398 = vmatprep.subr.mxu0 0.0
      %399 = vmatpush1.msra.mxu0 %v349
      %400 = vmatprep.subr.mxu0 0.0
      %401 = vmatpush1.msra.mxu0 %v350
      %402 = vmatprep.subr.mxu0 0.0
      %403 = vmatpush1.msra.mxu0 %v351
      %404 = vmatprep.subr.mxu0 0.0
      %405 = vmatpush1.msra.mxu0 %v352
      %406 = vmatprep.subr.mxu0 0.0
      %407 = vmatpush1.msra.mxu0 0.0
      %408 = vmatprep.subr.mxu0 0.0
      %409 = vmatpush1.msra.mxu0 0.0
      %410 = vmatprep.subr.mxu0 0.0
      %411 = vmatpush1.msra.mxu0 0.0
      %412 = vmatprep.subr.mxu0 0.0
      %413 = vmatpush1.msra.mxu0 0.0
      %414 = vmatprep.subr.mxu0 0.0
      %415 = vmatpush1.msra.mxu0 0.0
      %416 = vmatprep.subr.mxu0 0.0
      %417 = vmatpush1.msra.mxu0 0.0
      %418 = vmatprep.subr.mxu0 0.0
      %419 = vmatpush1.msra.mxu0 0.0
      %420 = vmatprep.subr.mxu0 0.0
      %421 = vmatpush1.msra.mxu0 0.0
      %422 = vmatprep.subr.mxu0 0.0
      %423 = vmatpush1.msra.mxu0 0.0
      %424 = vmatprep.subr.mxu0 0.0
      %425 = vmatpush1.msra.mxu0 0.0
      %426 = vmatprep.subr.mxu0 0.0
      %427 = vmatpush1.msra.mxu0 0.0
      %428 = vmatprep.subr.mxu0 0.0
      %429 = vmatpush1.msra.mxu0 0.0
      %430 = vmatprep.subr.mxu0 0.0
      %431 = vmatpush1.msra.mxu0 0.0
      %432 = vmatprep.subr.mxu0 0.0
      %433 = vmatpush1.msra.mxu0 0.0
      %434 = vmatprep.subr.mxu0 0.0
      %435 = vmatpush1.msra.mxu0 0.0
      %436 = vmatprep.subr.mxu0 0.0
      %437 = vmatpush1.msra.mxu0 0.0
      %438 = vmatprep.subr.mxu0 0.0
      %439 = vmatpush1.msra.mxu0 0.0
      %440 = vmatprep.subr.mxu0 0.0
      %441 = vmatpush1.msra.mxu0 0.0
      %442 = vmatprep.subr.mxu0 0.0
      %443 = vmatpush1.msra.mxu0 0.0
      %444 = vmatprep.subr.mxu0 0.0
      %445 = vmatpush1.msra.mxu0 0.0
      %446 = vmatprep.mubr.f32.mxu0 0.0
      %447 = vmatmul.mubr.f32.gmra.mrb[0].mxu0 %v377
      %v448 = vpop.f32.mrb[0].mxu0
      %v449 = vadd.f32 %v374, %v448
      %v450 = vpop.f32.mrb[0].mxu0
      %451 = vmatprep.mubr.f32.mxu0 0.0
      %452 = vmatmul.mubr.f32.gmra.mrb[0].mxu0 %v380
      %v453 = vpop.f32.mrb[0].mxu0
      %v454 = vadd.f32 %v374, %v453
      %v455 = vpop.f32.mrb[0].mxu0
      %456 = vdwg.mxu0
      %v457 = vmax.f32 %v449, 0.0
      %v458 = vmax.f32 %v454, 0.0
      %v459 = vlaneseq
      %v460 = vshrl.u32 %v459, 7
      %v461 = vsub.s32 0, %v460
      %v462 = vrot.slane %v366, %v461
      %v464 = vsel %vm335, %v457, 0
      %v467 = vsel %vm335, %v458, 0
      %469 = vmatprep.subr.mxu0 0.0
      %470 = vmatpush1.msra.mxu0 %v353
      %471 = vmatprep.subr.mxu0 0.0
      %472 = vmatpush1.msra.mxu0 %v354
      %473 = vmatprep.subr.mxu0 0.0
      %474 = vmatpush1.msra.mxu0 %v355
      %475 = vmatprep.subr.mxu0 0.0
      %476 = vmatpush1.msra.mxu0 %v356
      %477 = vmatprep.subr.mxu0 0.0
      %478 = vmatpush1.msra.mxu0 0.0
      %479 = vmatprep.subr.mxu0 0.0
      %480 = vmatpush1.msra.mxu0 0.0
      %481 = vmatprep.subr.mxu0 0.0
      %482 = vmatpush1.msra.mxu0 0.0
      %483 = vmatprep.subr.mxu0 0.0
      %484 = vmatpush1.msra.mxu0 0.0
      %485 = vmatprep.subr.mxu0 0.0
      %486 = vmatpush1.msra.mxu0 0.0
      %487 = vmatprep.subr.mxu0 0.0
      %488 = vmatpush1.msra.mxu0 0.0
      %489 = vmatprep.subr.mxu0 0.0
      %490 = vmatpush1.msra.mxu0 0.0
      %491 = vmatprep.subr.mxu0 0.0
      %492 = vmatpush1.msra.mxu0 0.0
      %493 = vmatprep.subr.mxu0 0.0
      %494 = vmatpush1.msra.mxu0 0.0
      %495 = vmatprep.subr.mxu0 0.0
      %496 = vmatpush1.msra.mxu0 0.0
      %497 = vmatprep.subr.mxu0 0.0
      %498 = vmatpush1.msra.mxu0 0.0
      %499 = vmatprep.subr.mxu0 0.0
      %500 = vmatpush1.msra.mxu0 0.0
      %501 = vmatprep.subr.mxu0 0.0
      %502 = vmatpush1.msra.mxu0 0.0
      %503 = vmatprep.subr.mxu0 0.0
      %504 = vmatpush1.msra.mxu0 0.0
      %505 = vmatprep.subr.mxu0 0.0
      %506 = vmatpush1.msra.mxu0 0.0
      %507 = vmatprep.subr.mxu0 0.0
      %508 = vmatpush1.msra.mxu0 0.0
      %509 = vmatprep.subr.mxu0 0.0
      %510 = vmatpush1.msra.mxu0 0.0
      %511 = vmatprep.subr.mxu0 0.0
      %512 = vmatpush1.msra.mxu0 0.0
      %513 = vmatprep.subr.mxu0 0.0
      %514 = vmatpush1.msra.mxu0 0.0
      %515 = vmatprep.subr.mxu0 0.0
      %516 = vmatpush1.msra.mxu0 0.0
      %517 = vmatprep.subr.mxu0 0.0
      %518 = vmatpush1.msra.mxu0 0.0
      %519 = vmatprep.subr.mxu0 0.0
      %520 = vmatpush1.msra.mxu0 0.0
      %521 = vmatprep.subr.mxu0 0.0
      %522 = vmatpush1.msra.mxu0 0.0
      %523 = vmatprep.subr.mxu0 0.0
      %524 = vmatpush1.msra.mxu0 0.0
      %525 = vmatprep.subr.mxu0 0.0
      %526 = vmatpush1.msra.mxu0 0.0
      %527 = vmatprep.subr.mxu0 0.0
      %528 = vmatpush1.msra.mxu0 0.0
      %529 = vmatprep.subr.mxu0 0.0
      %530 = vmatpush1.msra.mxu0 0.0
      %531 = vmatprep.subr.mxu0 0.0
      %532 = vmatpush1.msra.mxu0 0.0
      %533 = vmatprep.mubr.f32.mxu0 0.0
      %534 = vmatmul.mubr.f32.gmra.mrb[0].mxu0 %v464
      %v535 = vpop.f32.mrb[0].mxu0
      %v536 = vadd.f32 %v462, %v535
      %v537 = vpop.f32.mrb[0].mxu0
      %538 = vmatprep.mubr.f32.mxu0 0.0
      %539 = vmatmul.mubr.f32.gmra.mrb[0].mxu0 %v467
      %v540 = vpop.f32.mrb[0].mxu0
      %v541 = vadd.f32 %v462, %v540
      %v542 = vpop.f32.mrb[0].mxu0
      %543 = vdwg.mxu0
      %v544 = vmax.f32 %v536, 0.0
      %v545 = vmax.f32 %v541, 0.0
      %v546 = vlaneseq
      %v547 = vshrl.u32 %v546, 7
      %v548 = vsub.s32 0, %v547
      %v549 = vrot.slane %v367, %v548
      %v551 = vsel %vm335, %v544, 0
      %v554 = vsel %vm335, %v545, 0
      %556 = vmatprep.subr.mxu0 0.0
      %557 = vmatpush1.msra.mxu0 %v357
      %558 = vmatprep.subr.mxu0 0.0
      %559 = vmatpush1.msra.mxu0 %v358
      %560 = vmatprep.subr.mxu0 0.0
      %561 = vmatpush1.msra.mxu0 %v359
      %562 = vmatprep.subr.mxu0 0.0
      %563 = vmatpush1.msra.mxu0 %v360
      %564 = vmatprep.subr.mxu0 0.0
      %565 = vmatpush1.msra.mxu0 0.0
      %566 = vmatprep.subr.mxu0 0.0
      %567 = vmatpush1.msra.mxu0 0.0
      %568 = vmatprep.subr.mxu0 0.0
      %569 = vmatpush1.msra.mxu0 0.0
      %570 = vmatprep.subr.mxu0 0.0
      %571 = vmatpush1.msra.mxu0 0.0
      %572 = vmatprep.subr.mxu0 0.0
      %573 = vmatpush1.msra.mxu0 0.0
      %574 = vmatprep.subr.mxu0 0.0
      %575 = vmatpush1.msra.mxu0 0.0
      %576 = vmatprep.subr.mxu0 0.0
      %577 = vmatpush1.msra.mxu0 0.0
      %578 = vmatprep.subr.mxu0 0.0
      %579 = vmatpush1.msra.mxu0 0.0
      %580 = vmatprep.subr.mxu0 0.0
      %581 = vmatpush1.msra.mxu0 0.0
      %582 = vmatprep.subr.mxu0 0.0
      %583 = vmatpush1.msra.mxu0 0.0
      %584 = vmatprep.subr.mxu0 0.0
      %585 = vmatpush1.msra.mxu0 0.0
      %586 = vmatprep.subr.mxu0 0.0
      %587 = vmatpush1.msra.mxu0 0.0
      %588 = vmatprep.subr.mxu0 0.0
      %589 = vmatpush1.msra.mxu0 0.0
      %590 = vmatprep.subr.mxu0 0.0
      %591 = vmatpush1.msra.mxu0 0.0
      %592 = vmatprep.subr.mxu0 0.0
      %593 = vmatpush1.msra.mxu0 0.0
      %594 = vmatprep.subr.mxu0 0.0
      %595 = vmatpush1.msra.mxu0 0.0
      %596 = vmatprep.subr.mxu0 0.0
      %597 = vmatpush1.msra.mxu0 0.0
      %598 = vmatprep.subr.mxu0 0.0
      %599 = vmatpush1.msra.mxu0 0.0
      %600 = vmatprep.subr.mxu0 0.0
      %601 = vmatpush1.msra.mxu0 0.0
      %602 = vmatprep.subr.mxu0 0.0
      %603 = vmatpush1.msra.mxu0 0.0
      %604 = vmatprep.subr.mxu0 0.0
      %605 = vmatpush1.msra.mxu0 0.0
      %606 = vmatprep.subr.mxu0 0.0
      %607 = vmatpush1.msra.mxu0 0.0
      %608 = vmatprep.subr.mxu0 0.0
      %609 = vmatpush1.msra.mxu0 0.0
      %610 = vmatprep.subr.mxu0 0.0
      %611 = vmatpush1.msra.mxu0 0.0
      %612 = vmatprep.subr.mxu0 0.0
      %613 = vmatpush1.msra.mxu0 0.0
      %614 = vmatprep.subr.mxu0 0.0
      %615 = vmatpush1.msra.mxu0 0.0
      %616 = vmatprep.subr.mxu0 0.0
      %617 = vmatpush1.msra.mxu0 0.0
      %618 = vmatprep.subr.mxu0 0.0
      %619 = vmatpush1.msra.mxu0 0.0
      %620 = vmatprep.mubr.f32.mxu0 0.0
      %621 = vmatmul.mubr.f32.gmra.mrb[0].mxu0 %v551
      %v622 = vpop.f32.mrb[0].mxu0
      %v623 = vadd.f32 %v549, %v622
      %v624 = vpop.f32.mrb[0].mxu0
      %625 = vmatprep.mubr.f32.mxu0 0.0
      %626 = vmatmul.mubr.f32.gmra.mrb[0].mxu0 %v554
      %v627 = vpop.f32.mrb[0].mxu0
      %v628 = vadd.f32 %v549, %v627
      %v629 = vpop.f32.mrb[0].mxu0
      %630 = vdwg.mxu0
      %v631 = vmax.f32 %v623, 0.0
      %v632 = vmax.f32 %v628, 0.0
      %v633 = vlaneseq
      %v634 = vshrl.u32 %v633, 7
      %v635 = vsub.s32 0, %v634
      %v636 = vrot.slane %v368, %v635
      %v638 = vsel %vm335, %v631, 0
      %v641 = vsel %vm335, %v632, 0
      %643 = vmatprep.subr.mxu0 0.0
      %644 = vmatpush1.msra.mxu0 %v361
      %645 = vmatprep.subr.mxu0 0.0
      %646 = vmatpush1.msra.mxu0 %v362
      %647 = vmatprep.subr.mxu0 0.0
      %648 = vmatpush1.msra.mxu0 %v363
      %649 = vmatprep.subr.mxu0 0.0
      %650 = vmatpush1.msra.mxu0 %v364
      %651 = vmatprep.subr.mxu0 0.0
      %652 = vmatpush1.msra.mxu0 0.0
      %653 = vmatprep.subr.mxu0 0.0
      %654 = vmatpush1.msra.mxu0 0.0
      %655 = vmatprep.subr.mxu0 0.0
      %656 = vmatpush1.msra.mxu0 0.0
      %657 = vmatprep.subr.mxu0 0.0
      %658 = vmatpush1.msra.mxu0 0.0
      %659 = vmatprep.subr.mxu0 0.0
      %660 = vmatpush1.msra.mxu0 0.0
      %661 = vmatprep.subr.mxu0 0.0
      %662 = vmatpush1.msra.mxu0 0.0
      %663 = vmatprep.subr.mxu0 0.0
      %664 = vmatpush1.msra.mxu0 0.0
      %665 = vmatprep.subr.mxu0 0.0
      %666 = vmatpush1.msra.mxu0 0.0
      %667 = vmatprep.subr.mxu0 0.0
      %668 = vmatpush1.msra.mxu0 0.0
      %669 = vmatprep.subr.mxu0 0.0
      %670 = vmatpush1.msra.mxu0 0.0
      %671 = vmatprep.subr.mxu0 0.0
      %672 = vmatpush1.msra.mxu0 0.0
      %673 = vmatprep.subr.mxu0 0.0
      %674 = vmatpush1.msra.mxu0 0.0
      %675 = vmatprep.subr.mxu0 0.0
      %676 = vmatpush1.msra.mxu0 0.0
      %677 = vmatprep.subr.mxu0 0.0
      %678 = vmatpush1.msra.mxu0 0.0
      %679 = vmatprep.subr.mxu0 0.0
      %680 = vmatpush1.msra.mxu0 0.0
      %681 = vmatprep.subr.mxu0 0.0
      %682 = vmatpush1.msra.mxu0 0.0
      %683 = vmatprep.subr.mxu0 0.0
      %684 = vmatpush1.msra.mxu0 0.0
      %685 = vmatprep.subr.mxu0 0.0
      %686 = vmatpush1.msra.mxu0 0.0
      %687 = vmatprep.subr.mxu0 0.0
      %688 = vmatpush1.msra.mxu0 0.0
      %689 = vmatprep.subr.mxu0 0.0
      %690 = vmatpush1.msra.mxu0 0.0
      %691 = vmatprep.subr.mxu0 0.0
      %692 = vmatpush1.msra.mxu0 0.0
      %693 = vmatprep.subr.mxu0 0.0
      %694 = vmatpush1.msra.mxu0 0.0
      %695 = vmatprep.subr.mxu0 0.0
      %696 = vmatpush1.msra.mxu0 0.0
      %697 = vmatprep.subr.mxu0 0.0
      %698 = vmatpush1.msra.mxu0 0.0
      %699 = vmatprep.subr.mxu0 0.0
      %700 = vmatpush1.msra.mxu0 0.0
      %701 = vmatprep.subr.mxu0 0.0
      %702 = vmatpush1.msra.mxu0 0.0
      %703 = vmatprep.subr.mxu0 0.0
      %704 = vmatpush1.msra.mxu0 0.0
      %705 = vmatprep.subr.mxu0 0.0
      %706 = vmatpush1.msra.mxu0 0.0
      %707 = vmatprep.mubr.f32.mxu0 0.0
      %708 = vmatmul.mubr.f32.gmra.mrb[0].mxu0 %v638
      %v709 = vpop.f32.mrb[0].mxu0
      %v710 = vadd.f32 %v636, %v709
      %v711 = vpop.f32.mrb[0].mxu0
      %712 = vmatprep.mubr.f32.mxu0 0.0
      %713 = vmatmul.mubr.f32.gmra.mrb[0].mxu0 %v641
      %v714 = vpop.f32.mrb[0].mxu0
      %v715 = vadd.f32 %v636, %v714
      %v716 = vpop.f32.mrb[0].mxu0
      %717 = vdwg.mxu0
      %v718 = vsel %vm335, %v710, 0.0
      %719 = vadd.xlane.f32.xlu0 %v718
      %v720 = vpop.xlane.xlu0 %719
      %v721 = vsel %vm335, %v715, 0.0
      %722 = vadd.xlane.f32.xlu0 %v721
      %v723 = vpop.xlane.xlu0 %722
      %v724 = vrcp.pop 32.0
      %v725 = vmul.f32 %v720, %v724
      %v726 = vmul.f32 %v723, %v724
      %v727 = vsub.f32 %v710, %v725
      %v728 = vsub.f32 %v715, %v726
      %v729 = vmul.f32 %v727, %v727
      %v730 = vmul.f32 %v728, %v728
      %v731 = vsel %vm335, %v729, 0.0
      %732 = vadd.xlane.f32.xlu0 %v731
      %v733 = vpop.xlane.xlu0 %732
      %v734 = vsel %vm335, %v730, 0.0
      %735 = vadd.xlane.f32.xlu0 %v734
      %v736 = vpop.xlane.xlu0 %735
      %v737 = vmul.f32 %v733, %v724
      %v738 = vmul.f32 %v736, %v724
      %v739 = vadd.f32 %v737, 1e-05
      %v740 = vadd.f32 %v738, 1e-05
      %v741 = vrsqrt.pop %v739
      %v742 = vrsqrt.pop %v740
      %v743 = vmul.f32 %v727, %v741
      %v744 = vmul.f32 %v728, %v742
      %v745 = vlaneseq
      %v746 = vshrl.u32 %v745, 7
      %v747 = vsub.s32 0, %v746
      %v748 = vrot.slane %v369, %v747
      %v749 = vmul.f32 %v743, %v748
      %v750 = vmul.f32 %v744, %v748
      %v751 = vlaneseq
      %v752 = vshrl.u32 %v751, 7
      %v753 = vsub.s32 0, %v752
      %v754 = vrot.slane %v370, %v753
      %v755 = vadd.f32 %v749, %v754
      %v756 = vadd.f32 %v750, %v754
      %757 = vst.msk [vmem:[%s305] sm:$0xff] %vm335, %v755
      %758 = vst.msk [vmem:[%s305 + $0x8] sm:$0xff] %vm335, %v756
      %v759 = vadd.f32 %v755, %v313
      %v760 = vadd.f32 %v756, %v314
      %761 = vst.msk [vmem:[%s311] sm:$0xff] %vm335, %v759
      %762 = vst.msk [vmem:[%s311 + $0x8] sm:$0xff] %vm335, %v760
      %s763 = smul.u32 2, %s18
      %p764 = scmp.lt.s32.totalorder %s763, 5
      %s765 = scalar_select %p764, %s763, 5
      %s766 = smul.addr %s765, 8
      %s767 = scalar_lea.vmem %s5, %s766
      %s768 = smul.u32 2, %s18
      %p769 = scmp.lt.s32.totalorder %s768, 5
      %s770 = scalar_select %p769, %s768, 5
      %s771 = smul.addr %s770, 8
      %s772 = scalar_lea.vmem %s6, %s771
      // Predicated region
      $region41: #{tpu_custom_call.1} parent=39 // pred_check
        %p773 = pneg %p156
      $region42: #{tpu_custom_call.1} parent=39 // pred_check_branch
        %775 = sbr.rel (%p773) target = $region44
      $region43: #{tpu_custom_call.1} parent=39 // pred_region
        %s776 = smul.u32 2, %s18
      $region44: #{tpu_custom_call.1} parent=39 // pred_fallthru
        _
      // Predicated region
      $region45: #{tpu_custom_call.1} parent=39 // pred_check
        %p777 = pneg %p182
      $region46: #{tpu_custom_call.1} parent=39 // pred_check_branch
        %779 = sbr.rel (%p777) target = $region48
      $region47: #{tpu_custom_call.1} parent=39 // pred_region
        %s780 = smul.u32 2, %s18
      $region48: #{tpu_custom_call.1} parent=39 // pred_fallthru
        _
    $region40: #{tpu_custom_call.1} parent=5 // pred_fallthru
      _
    %p781 = scmp.le.s32.totalorder 2, %s13
    // Predicated region
    $region49: #{tpu_custom_call.1} parent=5 // pred_check
      %p782 = pneg %p781
    $region50: #{tpu_custom_call.1} parent=5 // pred_check_branch
      %784 = sbr.rel (%p782) target = $region52
    $region51: #{tpu_custom_call.1} parent=5 // pred_region
      %s785 = ssub.s32 %s13, 2
      // Predicated region
      $region53: #{tpu_custom_call.1} parent=51 // pred_check
        %p786 = pneg %p162
      $region54: #{tpu_custom_call.1} parent=51 // pred_check_branch
        %788 = sbr.rel (%p786) target = $region56
      $region55: #{tpu_custom_call.1} parent=51 // pred_region
        %s789 = smul.u32 2, %s19
        %p790 = scmp.lt.s32.totalorder %s789, 5
        %s791 = scalar_select %p790, %s789, 5
        %s792 = smul.addr %s791, 8
        %s793 = scalar_lea.vmem %s5, %s792
      $region56: #{tpu_custom_call.1} parent=51 // pred_fallthru
        _
      // Predicated region
      $region57: #{tpu_custom_call.1} parent=51 // pred_check
        %p794 = pneg %p188
      $region58: #{tpu_custom_call.1} parent=51 // pred_check_branch
        %796 = sbr.rel (%p794) target = $region60
      $region59: #{tpu_custom_call.1} parent=51 // pred_region
        %s797 = smul.u32 2, %s19
        %p798 = scmp.lt.s32.totalorder %s797, 5
        %s799 = scalar_select %p798, %s797, 5
        %s800 = smul.addr %s799, 8
        %s801 = scalar_lea.vmem %s6, %s800
      $region60: #{tpu_custom_call.1} parent=51 // pred_fallthru
        _
    $region52: #{tpu_custom_call.1} parent=5 // pred_fallthru
      _
  $region6: #{tpu_custom_call.1} parent=0 // loop_footer
    %s17 = sadd.s32 1, %s13
  $region7: #{tpu_custom_call.1} parent=0 // loop_footer_branch
    %12 = sbr.rel target = $region3
  $region8: #{tpu_custom_call.1} parent=0 // loop_exit
    _

</llo_original>
